<compile_context>
chip_gen: v7x
topology: tpu7x:2x2x1
jax: 0.10.0
libtpu: 0.0.40
codegen_flags: <defaults>
</compile_context>

<pallas_src>
import functools

import jax
import jax.numpy as jnp
from jax.experimental import pallas as pl
from jax.experimental.pallas import tpu as pltpu

_LANE = 128
_EPS = 1e-8


def _mape_kernel(o_ref, t_ref, acc_ref, *, rows, tile_rows, inner_steps,
                 need_mask):
    """Accumulate per-lane partial sums of |(o - t) / (t + eps)| per core."""
    i = pl.program_id(1)

    @pl.when(i == 0)
    def _():
        acc_ref[...] = jnp.zeros_like(acc_ref)

    o = o_ref[...].astype(jnp.float32)
    t = t_ref[...].astype(jnp.float32)
    err = jnp.abs((o - t) / (t + _EPS))

    if need_mask:
        # Last row-block (or a clamped duplicate block on the second core)
        # overlaps / exceeds the end of the slab: zero out invalid rows.
        p = pl.program_id(0)
        row0 = (p * inner_steps + i) * tile_rows
        row_idx = jax.lax.broadcasted_iota(jnp.int32, err.shape, 0)
        err = jnp.where(row_idx + row0 < rows, err, 0.0)

    # VPU-only partial reduce to an (8, 128) vector accumulator (no per-step
    # cross-lane XLU reduce, no scalar serialization).
    acc_ref[...] += err.reshape(-1, 8, _LANE).sum(axis=0)[None]


def mape_loss(outputs, targets, *, max_tile_rows=4096):
    """MAPE loss: mean(|(outputs - targets) / (targets + 1e-8)|) * 100."""
    assert outputs.shape == targets.shape
    o = outputs.reshape(-1)
    t = targets.reshape(-1)
    if o.dtype != t.dtype:
        ct = jnp.promote_types(o.dtype, t.dtype)
        o, t = o.astype(ct), t.astype(ct)
    n = o.shape[0]

    # Lane pad only when n is not a multiple of 128 (<=127 zeros; (0-0)/(0+eps)
    # contributes 0).  TODO(synk): a separate 1-D tail pass would avoid even
    # this copy, but it only triggers when n % 128 != 0.
    rem = (-n) % _LANE
    if rem:
        o = jnp.pad(o, (0, rem))
        t = jnp.pad(t, (0, rem))
    rows = (n + rem) // _LANE
    o2 = o.reshape(rows, _LANE)
    t2 = t.reshape(rows, _LANE)

    # Sublane granularity: 8 rows for 4-byte dtypes, 16 for 2-byte, 32 for 1B.
    itemsize = o2.dtype.itemsize
    sub = 8 * max(1, 4 // itemsize)
    max_tile_rows = max(sub, (max_tile_rows // sub) * sub)
    tile_rows = min(max_tile_rows, -(-rows // sub) * sub)

    num_blocks = -(-rows // tile_rows)
    num_cores = 2 if num_blocks >= 2 else 1       # megacore split on v7x
    inner_steps = -(-num_blocks // num_cores)
    need_mask = (num_cores * inner_steps * tile_rows) != rows

    kernel = functools.partial(
        _mape_kernel, rows=rows, tile_rows=tile_rows,
        inner_steps=inner_steps, need_mask=need_mask)

    def in_map(p, i):
        # Clamp so a possible overhang block (odd num_blocks) re-reads the last
        # valid block; its contribution is fully masked to zero in-kernel.
        return (jnp.minimum(p * inner_steps + i, num_blocks - 1), 0)

    partials = pl.pallas_call(
        kernel,
        out_shape=jax.ShapeDtypeStruct((num_cores, 8, _LANE), jnp.float32),
        grid_spec=pltpu.PrefetchScalarGridSpec(
            num_scalar_prefetch=0,
            grid=(num_cores, inner_steps),
            in_specs=[
                pl.BlockSpec((tile_rows, _LANE), in_map),
                pl.BlockSpec((tile_rows, _LANE), in_map),
            ],
            out_specs=pl.BlockSpec((1, 8, _LANE), lambda p, i: (p, 0, 0)),
        ),
        compiler_params=pltpu.CompilerParams(
            dimension_semantics=("parallel", "arbitrary")),
        cost_estimate=pl.CostEstimate(
            flops=5 * n,
            transcendentals=0,
            bytes_accessed=2 * rows * _LANE * itemsize
            + num_cores * 8 * _LANE * 4),
    )(o2, t2)

    # Tiny epilogue: one cross-lane reduce of (num_cores, 8, 128) + scale.
    return jnp.sum(partials) * (100.0 / n)


def _reference(outputs, targets):
    return jnp.mean(jnp.abs((outputs - targets) / (targets + _EPS))) * 100.0


if __name__ == "__main__":
    key = jax.random.PRNGKey(0)

    # Small shapes consistent with the module's use as a sequence-forecast loss.
    k1, k2, k3, k4, k5, k6 = jax.random.split(key, 6)

    # 1) n multiple of 128 (no pad, no mask).
    B, L, D = 2, 8, 32
    out_a = jax.random.normal(k1, (B, L, D), jnp.float32)
    tgt_a = jax.random.normal(k2, (B, L, D), jnp.float32)
    loss_a = jax.jit(mape_loss)(out_a, tgt_a)
    jax.block_until_ready(loss_a)
    assert loss_a.shape == ()
    assert bool(jnp.allclose(loss_a, _reference(out_a, tgt_a),
                             rtol=5e-4, atol=1e-3)), (loss_a,
                                                      _reference(out_a, tgt_a))

    # 2) ragged n (exercises lane pad + in-kernel row mask).
    out_b = jax.random.normal(k3, (2, 7, 33), jnp.float32)
    tgt_b = jax.random.normal(k4, (2, 7, 33), jnp.float32)
    loss_b = jax.jit(mape_loss)(out_b, tgt_b)
    jax.block_until_ready(loss_b)
    assert bool(jnp.allclose(loss_b, _reference(out_b, tgt_b),
                             rtol=5e-4, atol=1e-3)), (loss_b,
                                                      _reference(out_b, tgt_b))

    # 3) multi-block path (exercises 2-way parallel axis + accumulation).
    out_c = jax.random.normal(k5, (4, 64, 128), jnp.float32)
    tgt_c = jax.random.normal(k6, (4, 64, 128), jnp.float32)
    loss_c = jax.jit(functools.partial(mape_loss, max_tile_rows=64))(out_c,
                                                                     tgt_c)
    jax.block_until_ready(loss_c)
    assert bool(jnp.allclose(loss_c, _reference(out_c, tgt_c),
                             rtol=5e-4, atol=1e-3)), (loss_c,
                                                      _reference(out_c, tgt_c))

    print("KERNEL_OK")
</pallas_src>

<mosaic_0001>
module attributes {stable_mosaic.version = 11 : i64} {
  func.func @_mape_kernel(%arg0: i32, %arg1: i32, %arg2: memref<8x128xf32, #tpu.memory_space<vmem>>, %arg3: memref<8x128xf32, #tpu.memory_space<vmem>>, %arg4: memref<1x8x128xf32, #tpu.memory_space<vmem>>) attributes {dimension_semantics = [#tpu.dimension_semantics<parallel>, #tpu.dimension_semantics<arbitrary>], iteration_bounds = array<i64: 1, 1>, scalar_prefetch = 0 : i64, scratch_operands = 0 : i64, tpu.core_type = #tpu.core_type<tc>, window_params = [{transform_indices = @transform_0, window_bounds = array<i64: 8, 128>}, {transform_indices = @transform_1, window_bounds = array<i64: 8, 128>}, {transform_indices = @transform_2, window_bounds = array<i64: 1, 8, 128>}]} {
    %c0_i32 = arith.constant 0 : i32
    %0 = arith.cmpi eq, %arg1, %c0_i32 : i32
    %1 = arith.extui %0 : i1 to i32
    %c0_i32_0 = arith.constant 0 : i32
    %2 = arith.cmpi ne, %1, %c0_i32_0 : i32
    scf.if %2 {
      %cst_12 = arith.constant 0.000000e+00 : f32
      %26 = vector.broadcast %cst_12 : f32 to vector<1x8x128xf32>
      %c0_13 = arith.constant 0 : index
      %c0_14 = arith.constant 0 : index
      %c0_15 = arith.constant 0 : index
      %27 = vector.load %arg4[%c0_13, %c0_14, %c0_15] : memref<1x8x128xf32, #tpu.memory_space<vmem>>, vector<1x8x128xf32>
      tpu.vector_store %arg4[%c0_13, %c0_14, %c0_15], %26 {strides = array<i32>} : memref<1x8x128xf32, #tpu.memory_space<vmem>>, vector<1x8x128xf32>,
    } else {
    }
    %c0 = arith.constant 0 : index
    %c0_1 = arith.constant 0 : index
    %3 = vector.load %arg2[%c0, %c0_1] : memref<8x128xf32, #tpu.memory_space<vmem>>, vector<8x128xf32>
    %c0_2 = arith.constant 0 : index
    %c0_3 = arith.constant 0 : index
    %4 = vector.load %arg3[%c0_2, %c0_3] : memref<8x128xf32, #tpu.memory_space<vmem>>, vector<8x128xf32>
    %5 = arith.subf %3, %4 : vector<8x128xf32>
    %cst = arith.constant 9.99999993E-9 : f32
    %6 = vector.broadcast %cst : f32 to vector<8x128xf32>
    %7 = arith.addf %4, %6 : vector<8x128xf32>
    %8 = arith.divf %5, %7 : vector<8x128xf32>
    %9 = math.absf %8 : vector<8x128xf32>
    %c1_i32 = arith.constant 1 : i32
    %10 = arith.muli %arg0, %c1_i32 : i32
    %11 = arith.addi %10, %arg1 : i32
    %c8_i32 = arith.constant 8 : i32
    %12 = arith.muli %11, %c8_i32 : i32
    %13 = tpu.iota {dimensions = array<i32: 0>} : vector<8x128xi32>
    %14 = vector.broadcast %12 : i32 to vector<8x128xi32>
    %15 = arith.addi %13, %14 : vector<8x128xi32>
    %c4_i32 = arith.constant 4 : i32
    %16 = vector.broadcast %c4_i32 : i32 to vector<8x128xi32>
    %17 = arith.cmpi slt, %15, %16 : vector<8x128xi32>
    %cst_4 = arith.constant 0.000000e+00 : f32
    %18 = vector.broadcast %cst_4 : f32 to vector<8x128xf32>
    %19 = arith.select %17, %9, %18 : vector<8x128xi1>, vector<8x128xf32>
    %c0_5 = arith.constant 0 : index
    %c0_6 = arith.constant 0 : index
    %c0_7 = arith.constant 0 : index
    %20 = vector.load %arg4[%c0_5, %c0_6, %c0_7] : memref<1x8x128xf32, #tpu.memory_space<vmem>>, vector<1x8x128xf32>
    %21 = vector.shape_cast %19 : vector<8x128xf32> to vector<1x8x128xf32>
    %cst_8 = arith.constant dense<0.000000e+00> : vector<8x128xf32>
    %22 = vector.multi_reduction <add>, %21, %cst_8 [0] : vector<1x8x128xf32> to vector<8x128xf32>
    %23 = vector.shape_cast %22 : vector<8x128xf32> to vector<1x8x128xf32>
    %24 = arith.addf %20, %23 : vector<1x8x128xf32>
    %c0_9 = arith.constant 0 : index
    %c0_10 = arith.constant 0 : index
    %c0_11 = arith.constant 0 : index
    %25 = vector.load %arg4[%c0_9, %c0_10, %c0_11] : memref<1x8x128xf32, #tpu.memory_space<vmem>>, vector<1x8x128xf32>
    tpu.vector_store %arg4[%c0_9, %c0_10, %c0_11], %24 {strides = array<i32>} : memref<1x8x128xf32, #tpu.memory_space<vmem>>, vector<1x8x128xf32>,
    return
  }
  func.func @transform_0(%arg0: i32, %arg1: i32) -> (i32, i32) {
    %c1_i32 = arith.constant 1 : i32
    %0 = arith.muli %arg0, %c1_i32 : i32
    %1 = arith.addi %0, %arg1 : i32
    %c0_i32 = arith.constant 0 : i32
    %2 = arith.minsi %1, %c0_i32 : i32
    %c0_i32_0 = arith.constant 0 : i32
    %c0_i32_1 = arith.constant 0 : i32
    return %2, %c0_i32_0 : i32, i32
  }
  func.func @transform_1(%arg0: i32, %arg1: i32) -> (i32, i32) {
    %c1_i32 = arith.constant 1 : i32
    %0 = arith.muli %arg0, %c1_i32 : i32
    %1 = arith.addi %0, %arg1 : i32
    %c0_i32 = arith.constant 0 : i32
    %2 = arith.minsi %1, %c0_i32 : i32
    %c0_i32_0 = arith.constant 0 : i32
    %c0_i32_1 = arith.constant 0 : i32
    return %2, %c0_i32_0 : i32, i32
  }
  func.func @transform_2(%arg0: i32, %arg1: i32) -> (i32, i32, i32) {
    %c0_i32 = arith.constant 0 : i32
    %c0_i32_0 = arith.constant 0 : i32
    %c0_i32_1 = arith.constant 0 : i32
    return %arg0, %c0_i32, %c0_i32_0 : i32, i32, i32
  }
}

</mosaic_0001>

<llo_original>
// kernel: mape_loss.1
$region0: #{mape_loss.1}
  #allocation0 [shape = 'u32[]', space=smem, size = 0x4, offset = 0x4, fixed_abs, tag = 'smem constant byte address 0x4 - core index']
  #allocation1 [shape = 'u32[144,128]{1,0:T(1,128)}', space=vmem, size = 0x12000, scoped, tag = 'internal scratch']
  %s0 = inlined_call_operand.vmem [shape: f32[4,128], index: 0, kind: input, shape index: {}]
  %s1 = inlined_call_operand.vmem [shape: f32[4,128], index: 1, kind: input, shape index: {}]
  %s2 = inlined_call_operand.vmem [shape: f32[1,8,128], index: 2, kind: output, shape index: {}]
  %s3 = sld [smem:[#allocation0]]
  $region22: #{mape_loss.1} parent=0
    _
  %s5 = ssub.s32 1, %s3
  %s6 = scalar_select 0, %s5, %s3
  // Predicated region
  $region2: #{mape_loss.1} parent=0 // pred_check
    _
  $region3: #{mape_loss.1} parent=0 // pred_check_branch
    %8 = sbr.rel (0) target = $region5
  $region4: #{mape_loss.1} parent=0 // pred_region
    %s9 = sadd.s32 0, 0
    %p10 = scmp.lt.s32.totalorder %s9, 0
    %s11 = scalar_select %p10, %s9, 0
    %s12 = smul.u32 2, %s11
    %s13 = ssub.s32 1, %s12
    %s14 = smul.u32 64, %s13
    %p15 = scmp.lt.s32.totalorder %s12, 0
    %s16 = scalar_select %p15, %s12, 0
    %s17 = smul.addr %s16, 4
    %s18 = scalar_lea.vmem %s0, %s17
    %s19 = sadd.s32 0, 0
    %p20 = scmp.lt.s32.totalorder %s19, 0
    %s21 = scalar_select %p20, %s19, 0
    %s22 = smul.u32 2, %s21
    %s23 = ssub.s32 1, %s22
    %s24 = smul.u32 64, %s23
  $region5: #{mape_loss.1} parent=0 // pred_fallthru
    _
  // Predicated region
  $region6: #{mape_loss.1} parent=0 // pred_check
    _
  $region7: #{mape_loss.1} parent=0 // pred_check_branch
    %26 = sbr.rel (0) target = $region9
  $region8: #{mape_loss.1} parent=0 // pred_region
    %s27 = sadd.s32 0, 0
    %p28 = scmp.lt.s32.totalorder %s27, 0
    %s29 = scalar_select %p28, %s27, 0
    %s30 = smul.u32 2, %s29
    %s31 = ssub.s32 1, %s30
    %s32 = smul.u32 64, %s31
    %p33 = scmp.lt.s32.totalorder %s30, 0
    %s34 = scalar_select %p33, %s30, 0
    %s35 = smul.addr %s34, 4
    %s36 = scalar_lea.vmem %s1, %s35
    %s37 = sadd.s32 0, 0
    %p38 = scmp.lt.s32.totalorder %s37, 0
    %s39 = scalar_select %p38, %s37, 0
    %s40 = smul.u32 2, %s39
    %s41 = ssub.s32 1, %s40
    %s42 = smul.u32 64, %s41
  $region9: #{mape_loss.1} parent=0 // pred_fallthru
    _
  %s43 = sadd.s32 0, 0
  %p44 = scmp.lt.s32.totalorder %s43, 0
  %s45 = scalar_select %p44, %s43, 0
  %s46 = smul.u32 2, %s45
  %s47 = ssub.s32 1, %s46
  %s48 = smul.u32 64, %s47
  %p49 = scmp.lt.s32.totalorder %s46, 0
  %s50 = scalar_select %p49, %s46, 0
  %s51 = smul.addr %s50, 4
  %s52 = scalar_lea.vmem %s0, %s51
  %s53 = sadd.s32 0, 0
  %p54 = scmp.lt.s32.totalorder %s53, 0
  %s55 = scalar_select %p54, %s53, 0
  %s56 = smul.u32 2, %s55
  %s57 = ssub.s32 1, %s56
  %s58 = smul.u32 64, %s57
  %p59 = scmp.lt.s32.totalorder %s56, 0
  %s60 = scalar_select %p59, %s56, 0
  %s61 = smul.addr %s60, 4
  %s62 = scalar_lea.vmem %s1, %s61
  %s63 = sadd.s32 0, 0
  %p64 = scmp.lt.s32.totalorder %s63, 0
  %s65 = scalar_select %p64, %s63, 0
  %s66 = smul.u32 2, %s65
  %s67 = ssub.s32 1, %s66
  %s68 = smul.u32 64, %s67
  %p69 = scmp.lt.s32.totalorder %s66, 0
  %s70 = scalar_select %p69, %s66, 0
  %s71 = smul.addr %s70, 4
  %s72 = scalar_lea.vmem %s0, %s71
  %s73 = sadd.s32 0, 0
  %p74 = scmp.lt.s32.totalorder %s73, 0
  %s75 = scalar_select %p74, %s73, 0
  %s76 = smul.u32 2, %s75
  %s77 = ssub.s32 1, %s76
  %s78 = smul.u32 64, %s77
  %s79 = sadd.s32 0, 0
  %p80 = scmp.lt.s32.totalorder %s79, 0
  %s81 = scalar_select %p80, %s79, 0
  %s82 = smul.u32 2, %s81
  %s83 = ssub.s32 1, %s82
  %s84 = smul.u32 64, %s83
  %p85 = scmp.lt.s32.totalorder %s82, 0
  %s86 = scalar_select %p85, %s82, 0
  %s87 = smul.addr %s86, 4
  %s88 = scalar_lea.vmem %s1, %s87
  %s89 = sadd.s32 0, 0
  %p90 = scmp.lt.s32.totalorder %s89, 0
  %s91 = scalar_select %p90, %s89, 0
  %s92 = smul.u32 2, %s91
  %s93 = ssub.s32 1, %s92
  %s94 = smul.u32 64, %s93
  %p95 = scmp.eq.s32.totalorder 0, 0
  // Predicated region
  $region10: #{mape_loss.1} parent=0 // pred_check
    %p96 = pneg %p95
  $region11: #{mape_loss.1} parent=0 // pred_check_branch
    %98 = sbr.rel (%p96) target = $region13
  $region12: #{mape_loss.1} parent=0 // pred_region
    %99 = vst [vmem:[%s2] sm:$0xff] 0.0
  $region13: #{mape_loss.1} parent=0 // pred_fallthru
    _
  %v100 = vld [vmem:[%s72] sm:$0xff]
  %v101 = vld [vmem:[%s88] sm:$0xff]
  %v102 = vsub.f32 %v100, %v101
  %v103 = vadd.f32 %v101, 1e-08
  %v104 = vrcp.pop %v103
  %v105 = vmul.f32 %v102, %v104
  %v106 = vand.u32 2147483647, %v105
  %s107 = sadd.s32 0, 0
  %s108 = smul.u32 %s107, 8
  %v109 = vlaneseq
  %v110 = vshrl.u32 %v109, 7
  %v111 = vstv %s108
  %v112 = vadd.s32 %v110, %v111
  %vm113 = vcmp.lt.s32.totalorder %v112, 4
  %v114 = vsel %vm113, %v106, 0.0
  %v115 = vld [vmem:[%s2] sm:$0xff]
  %v116 = vadd.f32 %v114, 0.0
  %v117 = vadd.f32 %v115, %v116
  %118 = vst [vmem:[%s2] sm:$0xff] %v117
  // Predicated region
  $region14: #{mape_loss.1} parent=0 // pred_check
    _
  $region15: #{mape_loss.1} parent=0 // pred_check_branch
    %120 = sbr.rel (0) target = $region17
  $region16: #{mape_loss.1} parent=0 // pred_region
    _
  $region17: #{mape_loss.1} parent=0 // pred_fallthru
    _
  // Predicated region
  $region18: #{mape_loss.1} parent=0 // pred_check
    _
  $region19: #{mape_loss.1} parent=0 // pred_check_branch
    %122 = sbr.rel (0) target = $region21
  $region20: #{mape_loss.1} parent=0 // pred_region
    _
  $region21: #{mape_loss.1} parent=0 // pred_fallthru
    _

</llo_original>
